<compile_context>
chip_gen: v5e
topology: v5e:2x2
jax: 0.10.0
libtpu: 0.0.40
codegen_flags: <defaults>
</compile_context>

<pallas_src>
import functools

import jax
import jax.numpy as jnp
from jax.experimental import pallas as pl
from jax.experimental.pallas import tpu as pltpu

LANES = 128
SUBLANES = 8
GROUP = SUBLANES * LANES          # 1024 elements = one (8, 128) f32 vreg
MAX_GROUPS_PER_BLOCK = 512        # (512, 8, 128) f32 = 2 MiB/tile, 4 MiB 2x-buffered


@functools.lru_cache(maxsize=None)
def _num_tensorcores() -> int:
    """2 on dual-TensorCore parts (v7x); 1 on single-TC parts (v5e/v6e)."""
    try:
        kind = jax.devices()[0].device_kind.lower()
    except Exception:
        return 1
    return 2 if "v7" in kind else 1


# ----------------------------- kernel --------------------------------------- #
def _hist_kernel(params_ref, x_ref, hist_ref, *, bins, n_blocks,
                 blocks_per_core, rem_groups, has_dup):
    """Accumulate per-core, sublane+lane-resident int32 bin counts.

    x_ref   : (chunk, 8, 128) tile of the flattened, 1024-aligned input prefix.
    hist_ref: (bins*8, 128) per-core accumulator, VMEM-resident across the
              inner ("arbitrary") grid axis; bin b occupies rows [8b, 8b+8).
    """
    c = pl.program_id(0)              # core / "parallel" axis
    i = pl.program_id(1)              # sequential block axis
    lb = c * blocks_per_core + i      # logical block id

    @pl.when(i == 0)
    def _():
        hist_ref[...] = jnp.zeros_like(hist_ref)

    lo = params_ref[0]                # left histogram edge
    inv = params_ref[1]               # bins / range_width

    def accumulate(x):
        xf = x.astype(jnp.float32)
        # Truncation (astype) instead of floor: they only differ for a tiny
        # negative (x - lo) * inv, which the clip maps to bin 0 either way.
        idx = jnp.clip(((xf - lo) * inv).astype(jnp.int32), 0, bins - 1)
        # Per-bin compare + pure-VALU add tree over the leading (group) axis;
        # results stay in (8, 128) vreg layout -> no per-tile XLU reduce, no
        # sublane repacking (each concat piece is exactly one vreg tile).
        parts = [jnp.sum((idx == b).astype(jnp.int32), axis=0)
                 for b in range(bins)]
        hist_ref[...] += jnp.concatenate(parts, axis=0)

    if rem_groups is None:
        # Every logical block is completely full -> no tail handling anywhere.
        if has_dup:
            @pl.when(lb < n_blocks)        # skip clamped duplicate tail blocks
            def _():
                accumulate(x_ref[...])
        else:
            accumulate(x_ref[...])
    else:
        is_last = lb == n_blocks - 1
        # Interior blocks: unmasked fast path.
        @pl.when(jnp.logical_and(lb < n_blocks, jnp.logical_not(is_last)))
        def _():
            accumulate(x_ref[...])
        # Last real block: rem_groups is a Python int, so the valid prefix is a
        # static slice -- no per-element mask is ever computed.
        @pl.when(is_last)
        def _():
            accumulate(x_ref[pl.ds(0, rem_groups), :, :])


# ----------------------------- wrapper --------------------------------------- #
def _bin_params(flat, bins):
    """np.histogram-style range params (degenerate range -> [v-.5, v+.5])."""
    xmin = jnp.min(flat).astype(jnp.float32)
    xmax = jnp.max(flat).astype(jnp.float32)
    width = xmax - xmin
    lo = jnp.where(width > 0, xmin, xmin - jnp.float32(0.5))
    w = jnp.where(width > 0, width, jnp.float32(1.0))
    return lo, jnp.float32(bins) / w


def _jnp_bin_counts(vals, lo, inv, bins):
    """Tiny jnp path (ragged tail / <1024-element inputs); same bin formula."""
    xf = vals.astype(jnp.float32)
    idx = jnp.clip(((xf - lo) * inv).astype(jnp.int32), 0, bins - 1)
    return jnp.sum(idx[:, None] == jnp.arange(bins, dtype=jnp.int32)[None, :],
                   axis=0, dtype=jnp.int32)


@functools.partial(jax.jit, static_argnums=(1,))
def _histogram_counts(x, bins):
    flat = x.reshape(-1)
    n = flat.shape[0]

    # Pass 1: global min/max.  Under jit XLA fuses the sibling reductions into
    # a single HBM read; the scalar bin params reach the kernel via SMEM.
    lo, inv = _bin_params(flat, bins)
    params = jnp.stack([lo, inv])

    n_groups = n // GROUP
    n_main = n_groups * GROUP
    counts = jnp.zeros((bins,), jnp.int32)

    if n_groups > 0:
        # Aligned prefix only -- no full-array pad/concatenate copy.
        main = flat if n_main == n else flat[:n_main]
        x3d = main.reshape(n_groups, SUBLANES, LANES)

        chunk = min(MAX_GROUPS_PER_BLOCK, n_groups)
        n_blocks = -(-n_groups // chunk)
        num_cores = _num_tensorcores() if n_blocks > 1 else 1
        blocks_per_core = -(-n_blocks // num_cores)
        has_dup = num_cores * blocks_per_core > n_blocks
        rem_groups = n_groups - (n_blocks - 1) * chunk
        rem_groups = None if rem_groups == chunk else rem_groups   # static

        kernel = functools.partial(
            _hist_kernel, bins=bins, n_blocks=n_blocks,
            blocks_per_core=blocks_per_core, rem_groups=rem_groups,
            has_dup=has_dup)

        if has_dup:
            # Clamp so duplicate tail blocks DMA in bounds (their compute is
            # skipped in-kernel via pl.when).
            x_index_map = lambda c, i: (
                jnp.minimum(c * blocks_per_core + i, n_blocks - 1), 0, 0)
        else:
            x_index_map = lambda c, i: (c * blocks_per_core + i, 0, 0)

        hist = pl.pallas_call(
            kernel,
            out_shape=jax.ShapeDtypeStruct(
                (num_cores * bins * SUBLANES, LANES), jnp.int32),
            grid=(num_cores, blocks_per_core),
            in_specs=[
                pl.BlockSpec(memory_space=pltpu.MemorySpace.SMEM),  # (lo, inv)
                pl.BlockSpec((chunk, SUBLANES, LANES), x_index_map),
            ],
            out_specs=pl.BlockSpec((bins * SUBLANES, LANES),
                                   lambda c, i: (c, 0)),
            compiler_params=pltpu.CompilerParams(
                dimension_semantics=("parallel", "arbitrary")),
        )(params, x3d)

        counts = hist.reshape(num_cores, bins, SUBLANES, LANES).sum(
            axis=(0, 2, 3)).astype(jnp.int32)

    if n_main != n:
        # <=1023-element ragged tail folded in with a tiny one-hot sum.
        counts = counts + _jnp_bin_counts(flat[n_main:], lo, inv, bins)

    return counts


def histogram_forward(x, bins=16):
    """Returns (x_passthrough, bin_counts[int32, shape (bins,)])."""
    bins = int(bins)
    if x.size == 0:
        return x, jnp.zeros((bins,), jnp.int32)
    # HistHackFn is an identity: return x untouched (no passthrough copy).
    return x, _histogram_counts(x, bins)


# ----------------------------- reference ------------------------------------- #
def _ref_counts(x, bins):
    """Pure-jnp reference using the exact same binning formula as the kernel."""
    flat = x.reshape(-1)
    lo, inv = _bin_params(flat, bins)
    return _jnp_bin_counts(flat, lo, inv, bins)


# ------------------------------ demo ----------------------------------------- #
if __name__ == "__main__":
    key = jax.random.PRNGKey(0)
    cases = [
        # (input, bins)
        (jax.random.normal(key, (2, 4, 16, 16), dtype=jnp.float32), 16),        # aligned, single block
        (jax.random.normal(jax.random.fold_in(key, 1), (3, 5, 140),
                           dtype=jnp.float32), 10),                              # ragged tail
        (jnp.full((4, 256), 2.5, dtype=jnp.float32), 7),                         # degenerate range
        (jax.random.normal(jax.random.fold_in(key, 2), (8, 320, 260),
                           dtype=jnp.float32), 16),                              # multi-block, partial last
        (jax.random.normal(jax.random.fold_in(key, 3), (3, 5, 14),
                           dtype=jnp.float32), 5),                               # < 1024 elems (jnp path)
    ]

    for x, bins in cases:
        x_out, counts = histogram_forward(x, bins=bins)
        x_out = jax.block_until_ready(x_out)
        counts = jax.block_until_ready(counts)

        # forward must be an exact identity
        assert x_out.shape == x.shape and bool(jnp.array_equal(x_out, x)), \
            "passthrough mismatch"
        # every element must land in exactly one bin
        assert counts.shape == (bins,)
        assert int(jnp.sum(counts)) == x.size, \
            f"count sum {int(jnp.sum(counts))} != {x.size}"
        # exact match vs. a pure-jnp reference using the same binning formula
        ref = _ref_counts(x, bins)
        assert bool(jnp.array_equal(counts, ref)), (counts, ref)

    print("KERNEL_OK")
</pallas_src>

<mosaic_0001>
module attributes {stable_mosaic.version = 11 : i64} {
  func.func @_hist_kernel(%arg0: i32, %arg1: i32, %arg2: memref<2xf32, #tpu.memory_space<smem>>, %arg3: memref<2x8x128xf32, #tpu.memory_space<vmem>>, %arg4: memref<128x128xi32, #tpu.memory_space<vmem>>) attributes {dimension_semantics = [#tpu.dimension_semantics<parallel>, #tpu.dimension_semantics<arbitrary>], iteration_bounds = array<i64: 1, 1>, scalar_prefetch = 0 : i64, scratch_operands = 0 : i64, tpu.core_type = #tpu.core_type<tc>, window_params = [{transform_indices = @transform_0, window_bounds = array<i64: 2>}, {transform_indices = @transform_1, window_bounds = array<i64: 2, 8, 128>}, {transform_indices = @transform_2, window_bounds = array<i64: 128, 128>}]} {
    %c0_i32 = arith.constant 0 : i32
    %0 = arith.cmpi eq, %arg1, %c0_i32 : i32
    %1 = arith.extui %0 : i1 to i32
    %c0_i32_0 = arith.constant 0 : i32
    %2 = arith.cmpi ne, %1, %c0_i32_0 : i32
    scf.if %2 {
      %c0_i32_26 = arith.constant 0 : i32
      %83 = vector.broadcast %c0_i32_26 : i32 to vector<128x128xi32>
      %c0_27 = arith.constant 0 : index
      %c0_28 = arith.constant 0 : index
      %84 = vector.load %arg4[%c0_27, %c0_28] : memref<128x128xi32, #tpu.memory_space<vmem>>, vector<128x128xi32>
      tpu.vector_store %arg4[%c0_27, %c0_28], %83 {strides = array<i32>} : memref<128x128xi32, #tpu.memory_space<vmem>>, vector<128x128xi32>,
    } else {
    }
    %c0 = arith.constant 0 : index
    %3 = memref.load %arg2[%c0] : memref<2xf32, #tpu.memory_space<smem>>
    %c1 = arith.constant 1 : index
    %4 = memref.load %arg2[%c1] : memref<2xf32, #tpu.memory_space<smem>>
    %c0_1 = arith.constant 0 : index
    %c0_2 = arith.constant 0 : index
    %c0_3 = arith.constant 0 : index
    %5 = vector.load %arg3[%c0_1, %c0_2, %c0_3] : memref<2x8x128xf32, #tpu.memory_space<vmem>>, vector<2x8x128xf32>
    %6 = vector.broadcast %3 : f32 to vector<2x8x128xf32>
    %7 = arith.subf %5, %6 : vector<2x8x128xf32>
    %8 = vector.broadcast %4 : f32 to vector<2x8x128xf32>
    %9 = arith.mulf %7, %8 : vector<2x8x128xf32>
    %10 = arith.fptosi %9 : vector<2x8x128xf32> to vector<2x8x128xi32>
    %c0_i32_4 = arith.constant 0 : i32
    %c15_i32 = arith.constant 15 : i32
    %11 = vector.broadcast %c0_i32_4 : i32 to vector<2x8x128xi32>
    %12 = arith.maxsi %11, %10 : vector<2x8x128xi32>
    %13 = vector.broadcast %c15_i32 : i32 to vector<2x8x128xi32>
    %14 = arith.minsi %13, %12 : vector<2x8x128xi32>
    %c0_i32_5 = arith.constant 0 : i32
    %15 = vector.broadcast %c0_i32_5 : i32 to vector<2x8x128xi32>
    %16 = arith.cmpi eq, %14, %15 : vector<2x8x128xi32>
    %17 = arith.extui %16 : vector<2x8x128xi1> to vector<2x8x128xi32>
    %cst = arith.constant dense<0> : vector<8x128xi32>
    %18 = vector.multi_reduction <add>, %17, %cst [0] : vector<2x8x128xi32> to vector<8x128xi32>
    %c1_i32 = arith.constant 1 : i32
    %19 = vector.broadcast %c1_i32 : i32 to vector<2x8x128xi32>
    %20 = arith.cmpi eq, %14, %19 : vector<2x8x128xi32>
    %21 = arith.extui %20 : vector<2x8x128xi1> to vector<2x8x128xi32>
    %cst_6 = arith.constant dense<0> : vector<8x128xi32>
    %22 = vector.multi_reduction <add>, %21, %cst_6 [0] : vector<2x8x128xi32> to vector<8x128xi32>
    %c2_i32 = arith.constant 2 : i32
    %23 = vector.broadcast %c2_i32 : i32 to vector<2x8x128xi32>
    %24 = arith.cmpi eq, %14, %23 : vector<2x8x128xi32>
    %25 = arith.extui %24 : vector<2x8x128xi1> to vector<2x8x128xi32>
    %cst_7 = arith.constant dense<0> : vector<8x128xi32>
    %26 = vector.multi_reduction <add>, %25, %cst_7 [0] : vector<2x8x128xi32> to vector<8x128xi32>
    %c3_i32 = arith.constant 3 : i32
    %27 = vector.broadcast %c3_i32 : i32 to vector<2x8x128xi32>
    %28 = arith.cmpi eq, %14, %27 : vector<2x8x128xi32>
    %29 = arith.extui %28 : vector<2x8x128xi1> to vector<2x8x128xi32>
    %cst_8 = arith.constant dense<0> : vector<8x128xi32>
    %30 = vector.multi_reduction <add>, %29, %cst_8 [0] : vector<2x8x128xi32> to vector<8x128xi32>
    %c4_i32 = arith.constant 4 : i32
    %31 = vector.broadcast %c4_i32 : i32 to vector<2x8x128xi32>
    %32 = arith.cmpi eq, %14, %31 : vector<2x8x128xi32>
    %33 = arith.extui %32 : vector<2x8x128xi1> to vector<2x8x128xi32>
    %cst_9 = arith.constant dense<0> : vector<8x128xi32>
    %34 = vector.multi_reduction <add>, %33, %cst_9 [0] : vector<2x8x128xi32> to vector<8x128xi32>
    %c5_i32 = arith.constant 5 : i32
    %35 = vector.broadcast %c5_i32 : i32 to vector<2x8x128xi32>
    %36 = arith.cmpi eq, %14, %35 : vector<2x8x128xi32>
    %37 = arith.extui %36 : vector<2x8x128xi1> to vector<2x8x128xi32>
    %cst_10 = arith.constant dense<0> : vector<8x128xi32>
    %38 = vector.multi_reduction <add>, %37, %cst_10 [0] : vector<2x8x128xi32> to vector<8x128xi32>
    %c6_i32 = arith.constant 6 : i32
    %39 = vector.broadcast %c6_i32 : i32 to vector<2x8x128xi32>
    %40 = arith.cmpi eq, %14, %39 : vector<2x8x128xi32>
    %41 = arith.extui %40 : vector<2x8x128xi1> to vector<2x8x128xi32>
    %cst_11 = arith.constant dense<0> : vector<8x128xi32>
    %42 = vector.multi_reduction <add>, %41, %cst_11 [0] : vector<2x8x128xi32> to vector<8x128xi32>
    %c7_i32 = arith.constant 7 : i32
    %43 = vector.broadcast %c7_i32 : i32 to vector<2x8x128xi32>
    %44 = arith.cmpi eq, %14, %43 : vector<2x8x128xi32>
    %45 = arith.extui %44 : vector<2x8x128xi1> to vector<2x8x128xi32>
    %cst_12 = arith.constant dense<0> : vector<8x128xi32>
    %46 = vector.multi_reduction <add>, %45, %cst_12 [0] : vector<2x8x128xi32> to vector<8x128xi32>
    %c8_i32 = arith.constant 8 : i32
    %47 = vector.broadcast %c8_i32 : i32 to vector<2x8x128xi32>
    %48 = arith.cmpi eq, %14, %47 : vector<2x8x128xi32>
    %49 = arith.extui %48 : vector<2x8x128xi1> to vector<2x8x128xi32>
    %cst_13 = arith.constant dense<0> : vector<8x128xi32>
    %50 = vector.multi_reduction <add>, %49, %cst_13 [0] : vector<2x8x128xi32> to vector<8x128xi32>
    %c9_i32 = arith.constant 9 : i32
    %51 = vector.broadcast %c9_i32 : i32 to vector<2x8x128xi32>
    %52 = arith.cmpi eq, %14, %51 : vector<2x8x128xi32>
    %53 = arith.extui %52 : vector<2x8x128xi1> to vector<2x8x128xi32>
    %cst_14 = arith.constant dense<0> : vector<8x128xi32>
    %54 = vector.multi_reduction <add>, %53, %cst_14 [0] : vector<2x8x128xi32> to vector<8x128xi32>
    %c10_i32 = arith.constant 10 : i32
    %55 = vector.broadcast %c10_i32 : i32 to vector<2x8x128xi32>
    %56 = arith.cmpi eq, %14, %55 : vector<2x8x128xi32>
    %57 = arith.extui %56 : vector<2x8x128xi1> to vector<2x8x128xi32>
    %cst_15 = arith.constant dense<0> : vector<8x128xi32>
    %58 = vector.multi_reduction <add>, %57, %cst_15 [0] : vector<2x8x128xi32> to vector<8x128xi32>
    %c11_i32 = arith.constant 11 : i32
    %59 = vector.broadcast %c11_i32 : i32 to vector<2x8x128xi32>
    %60 = arith.cmpi eq, %14, %59 : vector<2x8x128xi32>
    %61 = arith.extui %60 : vector<2x8x128xi1> to vector<2x8x128xi32>
    %cst_16 = arith.constant dense<0> : vector<8x128xi32>
    %62 = vector.multi_reduction <add>, %61, %cst_16 [0] : vector<2x8x128xi32> to vector<8x128xi32>
    %c12_i32 = arith.constant 12 : i32
    %63 = vector.broadcast %c12_i32 : i32 to vector<2x8x128xi32>
    %64 = arith.cmpi eq, %14, %63 : vector<2x8x128xi32>
    %65 = arith.extui %64 : vector<2x8x128xi1> to vector<2x8x128xi32>
    %cst_17 = arith.constant dense<0> : vector<8x128xi32>
    %66 = vector.multi_reduction <add>, %65, %cst_17 [0] : vector<2x8x128xi32> to vector<8x128xi32>
    %c13_i32 = arith.constant 13 : i32
    %67 = vector.broadcast %c13_i32 : i32 to vector<2x8x128xi32>
    %68 = arith.cmpi eq, %14, %67 : vector<2x8x128xi32>
    %69 = arith.extui %68 : vector<2x8x128xi1> to vector<2x8x128xi32>
    %cst_18 = arith.constant dense<0> : vector<8x128xi32>
    %70 = vector.multi_reduction <add>, %69, %cst_18 [0] : vector<2x8x128xi32> to vector<8x128xi32>
    %c14_i32 = arith.constant 14 : i32
    %71 = vector.broadcast %c14_i32 : i32 to vector<2x8x128xi32>
    %72 = arith.cmpi eq, %14, %71 : vector<2x8x128xi32>
    %73 = arith.extui %72 : vector<2x8x128xi1> to vector<2x8x128xi32>
    %cst_19 = arith.constant dense<0> : vector<8x128xi32>
    %74 = vector.multi_reduction <add>, %73, %cst_19 [0] : vector<2x8x128xi32> to vector<8x128xi32>
    %c15_i32_20 = arith.constant 15 : i32
    %75 = vector.broadcast %c15_i32_20 : i32 to vector<2x8x128xi32>
    %76 = arith.cmpi eq, %14, %75 : vector<2x8x128xi32>
    %77 = arith.extui %76 : vector<2x8x128xi1> to vector<2x8x128xi32>
    %cst_21 = arith.constant dense<0> : vector<8x128xi32>
    %78 = vector.multi_reduction <add>, %77, %cst_21 [0] : vector<2x8x128xi32> to vector<8x128xi32>
    %c0_22 = arith.constant 0 : index
    %c0_23 = arith.constant 0 : index
    %79 = vector.load %arg4[%c0_22, %c0_23] : memref<128x128xi32, #tpu.memory_space<vmem>>, vector<128x128xi32>
    %80 = tpu.concatenate %18, %22, %26, %30, %34, %38, %42, %46, %50, %54, %58, %62, %66, %70, %74, %78 in 0 : vector<8x128xi32>, vector<8x128xi32>, vector<8x128xi32>, vector<8x128xi32>, vector<8x128xi32>, vector<8x128xi32>, vector<8x128xi32>, vector<8x128xi32>, vector<8x128xi32>, vector<8x128xi32>, vector<8x128xi32>, vector<8x128xi32>, vector<8x128xi32>, vector<8x128xi32>, vector<8x128xi32>, vector<8x128xi32> -> vector<128x128xi32>
    %81 = arith.addi %79, %80 : vector<128x128xi32>
    %c0_24 = arith.constant 0 : index
    %c0_25 = arith.constant 0 : index
    %82 = vector.load %arg4[%c0_24, %c0_25] : memref<128x128xi32, #tpu.memory_space<vmem>>, vector<128x128xi32>
    tpu.vector_store %arg4[%c0_24, %c0_25], %81 {strides = array<i32>} : memref<128x128xi32, #tpu.memory_space<vmem>>, vector<128x128xi32>,
    return
  }
  func.func @transform_0(%arg0: i32, %arg1: i32) -> i32 {
    %c0_i32 = arith.constant 0 : i32
    %c0_i32_0 = arith.constant 0 : i32
    return %c0_i32 : i32
  }
  func.func @transform_1(%arg0: i32, %arg1: i32) -> (i32, i32, i32) {
    %c1_i32 = arith.constant 1 : i32
    %0 = arith.muli %arg0, %c1_i32 : i32
    %1 = arith.addi %0, %arg1 : i32
    %c0_i32 = arith.constant 0 : i32
    %c0_i32_0 = arith.constant 0 : i32
    %c0_i32_1 = arith.constant 0 : i32
    return %1, %c0_i32, %c0_i32_0 : i32, i32, i32
  }
  func.func @transform_2(%arg0: i32, %arg1: i32) -> (i32, i32) {
    %c0_i32 = arith.constant 0 : i32
    %c0_i32_0 = arith.constant 0 : i32
    return %arg0, %c0_i32 : i32, i32
  }
}

</mosaic_0001>

<llo_original>
// kernel: _histogram_counts.1
$region0: #{_histogram_counts.1}
  #allocation0 [shape = 'u32[]', space=smem, size = 0x4, offset = 0x4, fixed_abs, tag = 'smem constant byte address 0x4 - core index']
  #allocation1 [shape = 'u32[72,128]{1,0:T(1,128)}', space=vmem, size = 0x9000, scoped, tag = 'internal scratch']
  %s0 = inlined_call_operand.vmem [shape: f32[2], index: 0, kind: input, shape index: {}]
  %s1 = inlined_call_operand.vmem [shape: f32[2,8,128], index: 1, kind: input, shape index: {}]
  %s2 = inlined_call_operand.vmem [shape: s32[128,128], index: 2, kind: output, shape index: {}]
  %s3 = sld [smem:[#allocation0]]
  $region26: #{_histogram_counts.1} parent=0
    _
  %s5 = ssub.s32 1, %s3
  %s6 = scalar_select 0, %s5, %s3
  $region1: #{_histogram_counts.1} parent=0
    #allocation2 [shape = 'u8[512]{0}', space=smem, size = 0x200, scoped, tag = 'input window, operand 0, single buffered']
    #allocation3 [shape = 's32[1]{0}', space=sflag, size = 0x4, scoped, tag = 'scoped memory for _histogram_counts.1']
    %7 = vsyncpa [#allocation3], 0
    // Predicated region
    $region2: #{_histogram_counts.1} parent=1 // pred_check
      _
    $region3: #{_histogram_counts.1} parent=1 // pred_check_branch
      %9 = sbr.rel (0) target = $region5
    $region4: #{_histogram_counts.1} parent=1 // pred_region
      %11 = vsyncadd [#allocation3], 0
      %s13 = sshll.u32 %s0, 4
      %s14 = int_to_ptr.vmem [resolvable:$true] %s13
      %16 = dma.vmem_to_smem %s14, 16, [#allocation2], [#allocation3]
    $region5: #{_histogram_counts.1} parent=1 // pred_fallthru
      _
    // Predicated region
    $region6: #{_histogram_counts.1} parent=1 // pred_check
      _
    $region7: #{_histogram_counts.1} parent=1 // pred_check_branch
      %18 = sbr.rel (0) target = $region9
    $region8: #{_histogram_counts.1} parent=1 // pred_region
      %s19 = sadd.s32 0, 0
      %s20 = smul.u32 2, %s19
      %p21 = scmp.lt.s32.totalorder %s20, 1
      %s22 = scalar_select %p21, %s20, 1
      %s23 = smul.addr %s22, 8
      %s24 = scalar_lea.vmem %s1, %s23
      %s25 = sadd.s32 0, 0
      %s26 = smul.u32 2, %s25
    $region9: #{_histogram_counts.1} parent=1 // pred_fallthru
      _
    // Predicated region
    $region10: #{_histogram_counts.1} parent=1 // pred_check
      _
    $region11: #{_histogram_counts.1} parent=1 // pred_check_branch
      %28 = sbr.rel (0) target = $region13
    $region12: #{_histogram_counts.1} parent=1 // pred_region
      %30 = dma.done [#allocation3], 16
    $region13: #{_histogram_counts.1} parent=1 // pred_fallthru
      _
    %31 = sfence
    %s32 = sadd.s32 0, 0
    %s33 = smul.u32 2, %s32
    %p34 = scmp.lt.s32.totalorder %s33, 1
    %s35 = scalar_select %p34, %s33, 1
    %s36 = smul.addr %s35, 8
    %s37 = scalar_lea.vmem %s1, %s36
    %s38 = sadd.s32 0, 0
    %s39 = smul.u32 2, %s38
    %p40 = scmp.lt.s32.totalorder %s39, 1
    %s41 = scalar_select %p40, %s39, 1
    %s42 = smul.addr %s41, 8
    %s43 = scalar_lea.vmem %s1, %s42
    %s44 = sadd.s32 0, 0
    %s45 = smul.u32 2, %s44
    %p46 = scmp.eq.s32.totalorder 0, 0
    // Predicated region
    $region14: #{_histogram_counts.1} parent=1 // pred_check
      %p47 = pneg %p46
    $region15: #{_histogram_counts.1} parent=1 // pred_check_branch
      %49 = sbr.rel (%p47) target = $region17
    $region16: #{_histogram_counts.1} parent=1 // pred_region
      %50 = vst [vmem:[%s2] sm:$0xff] 0
      %51 = vst [vmem:[%s2 + $0x8] sm:$0xff] 0
      %52 = vst [vmem:[%s2 + $0x10] sm:$0xff] 0
      %53 = vst [vmem:[%s2 + $0x18] sm:$0xff] 0
      %54 = vst [vmem:[%s2 + $0x20] sm:$0xff] 0
      %55 = vst [vmem:[%s2 + $0x28] sm:$0xff] 0
      %56 = vst [vmem:[%s2 + $0x30] sm:$0xff] 0
      %57 = vst [vmem:[%s2 + $0x38] sm:$0xff] 0
      %58 = vst [vmem:[%s2 + $0x40] sm:$0xff] 0
      %59 = vst [vmem:[%s2 + $0x48] sm:$0xff] 0
      %60 = vst [vmem:[%s2 + $0x50] sm:$0xff] 0
      %61 = vst [vmem:[%s2 + $0x58] sm:$0xff] 0
      %62 = vst [vmem:[%s2 + $0x60] sm:$0xff] 0
      %63 = vst [vmem:[%s2 + $0x68] sm:$0xff] 0
      %64 = vst [vmem:[%s2 + $0x70] sm:$0xff] 0
      %65 = vst [vmem:[%s2 + $0x78] sm:$0xff] 0
    $region17: #{_histogram_counts.1} parent=1 // pred_fallthru
      _
    %s66 = sld [smem:[#allocation2]]
    %s67 = sld [smem:[#allocation2 + $0x1]]
    %v68 = vld [vmem:[%s43] sm:$0xff]
    %v69 = vld [vmem:[%s43 + $0x8] sm:$0xff]
    %v70 = vstv %s66
    %v71 = vsub.f32 %v68, %v70
    %v72 = vsub.f32 %v69, %v70
    %v73 = vstv %s67
    %v74 = vmul.f32 %v71, %v73
    %v75 = vmul.f32 %v72, %v73
    %v76 = vcvt.f32.s32.to.zero.pseudo %v74
    %v77 = vcvt.f32.s32.to.zero.pseudo %v75
    %vm78 = vcmp.gt.s32.totalorder %v76, 0
    %v79 = vsel %vm78, %v76, 0
    %vm80 = vcmp.gt.s32.totalorder %v77, 0
    %v81 = vsel %vm80, %v77, 0
    %vm82 = vcmp.lt.s32.totalorder %v79, 15
    %v83 = vsel %vm82, %v79, 15
    %vm84 = vcmp.lt.s32.totalorder %v81, 15
    %v85 = vsel %vm84, %v81, 15
    %vm86 = vcmp.eq.s32.totalorder %v83, 0
    %vm87 = vcmp.eq.s32.totalorder %v85, 0
    %v88 = vsel %vm86, 1, 0
    %v89 = vsel %vm87, 1, 0
    %v90 = vadd.s32 %v88, %v89
    %vm91 = vcmp.eq.s32.totalorder %v83, 1
    %vm92 = vcmp.eq.s32.totalorder %v85, 1
    %v93 = vsel %vm91, 1, 0
    %v94 = vsel %vm92, 1, 0
    %v95 = vadd.s32 %v93, %v94
    %vm96 = vcmp.eq.s32.totalorder %v83, 2
    %vm97 = vcmp.eq.s32.totalorder %v85, 2
    %v98 = vsel %vm96, 1, 0
    %v99 = vsel %vm97, 1, 0
    %v100 = vadd.s32 %v98, %v99
    %vm101 = vcmp.eq.s32.totalorder %v83, 3
    %vm102 = vcmp.eq.s32.totalorder %v85, 3
    %v103 = vsel %vm101, 1, 0
    %v104 = vsel %vm102, 1, 0
    %v105 = vadd.s32 %v103, %v104
    %vm106 = vcmp.eq.s32.totalorder %v83, 4
    %vm107 = vcmp.eq.s32.totalorder %v85, 4
    %v108 = vsel %vm106, 1, 0
    %v109 = vsel %vm107, 1, 0
    %v110 = vadd.s32 %v108, %v109
    %vm111 = vcmp.eq.s32.totalorder %v83, 5
    %vm112 = vcmp.eq.s32.totalorder %v85, 5
    %v113 = vsel %vm111, 1, 0
    %v114 = vsel %vm112, 1, 0
    %v115 = vadd.s32 %v113, %v114
    %vm116 = vcmp.eq.s32.totalorder %v83, 6
    %vm117 = vcmp.eq.s32.totalorder %v85, 6
    %v118 = vsel %vm116, 1, 0
    %v119 = vsel %vm117, 1, 0
    %v120 = vadd.s32 %v118, %v119
    %vm121 = vcmp.eq.s32.totalorder %v83, 7
    %vm122 = vcmp.eq.s32.totalorder %v85, 7
    %v123 = vsel %vm121, 1, 0
    %v124 = vsel %vm122, 1, 0
    %v125 = vadd.s32 %v123, %v124
    %vm126 = vcmp.eq.s32.totalorder %v83, 8
    %vm127 = vcmp.eq.s32.totalorder %v85, 8
    %v128 = vsel %vm126, 1, 0
    %v129 = vsel %vm127, 1, 0
    %v130 = vadd.s32 %v128, %v129
    %vm131 = vcmp.eq.s32.totalorder %v83, 9
    %vm132 = vcmp.eq.s32.totalorder %v85, 9
    %v133 = vsel %vm131, 1, 0
    %v134 = vsel %vm132, 1, 0
    %v135 = vadd.s32 %v133, %v134
    %vm136 = vcmp.eq.s32.totalorder %v83, 10
    %vm137 = vcmp.eq.s32.totalorder %v85, 10
    %v138 = vsel %vm136, 1, 0
    %v139 = vsel %vm137, 1, 0
    %v140 = vadd.s32 %v138, %v139
    %vm141 = vcmp.eq.s32.totalorder %v83, 11
    %vm142 = vcmp.eq.s32.totalorder %v85, 11
    %v143 = vsel %vm141, 1, 0
    %v144 = vsel %vm142, 1, 0
    %v145 = vadd.s32 %v143, %v144
    %vm146 = vcmp.eq.s32.totalorder %v83, 12
    %vm147 = vcmp.eq.s32.totalorder %v85, 12
    %v148 = vsel %vm146, 1, 0
    %v149 = vsel %vm147, 1, 0
    %v150 = vadd.s32 %v148, %v149
    %vm151 = vcmp.eq.s32.totalorder %v83, 13
    %vm152 = vcmp.eq.s32.totalorder %v85, 13
    %v153 = vsel %vm151, 1, 0
    %v154 = vsel %vm152, 1, 0
    %v155 = vadd.s32 %v153, %v154
    %vm156 = vcmp.eq.s32.totalorder %v83, 14
    %vm157 = vcmp.eq.s32.totalorder %v85, 14
    %v158 = vsel %vm156, 1, 0
    %v159 = vsel %vm157, 1, 0
    %v160 = vadd.s32 %v158, %v159
    %vm161 = vcmp.eq.s32.totalorder %v83, 15
    %vm162 = vcmp.eq.s32.totalorder %v85, 15
    %v163 = vsel %vm161, 1, 0
    %v164 = vsel %vm162, 1, 0
    %v165 = vadd.s32 %v163, %v164
    %v166 = vld [vmem:[%s2] sm:$0xff]
    %v167 = vld [vmem:[%s2 + $0x8] sm:$0xff]
    %v168 = vld [vmem:[%s2 + $0x10] sm:$0xff]
    %v169 = vld [vmem:[%s2 + $0x18] sm:$0xff]
    %v170 = vld [vmem:[%s2 + $0x20] sm:$0xff]
    %v171 = vld [vmem:[%s2 + $0x28] sm:$0xff]
    %v172 = vld [vmem:[%s2 + $0x30] sm:$0xff]
    %v173 = vld [vmem:[%s2 + $0x38] sm:$0xff]
    %v174 = vld [vmem:[%s2 + $0x40] sm:$0xff]
    %v175 = vld [vmem:[%s2 + $0x48] sm:$0xff]
    %v176 = vld [vmem:[%s2 + $0x50] sm:$0xff]
    %v177 = vld [vmem:[%s2 + $0x58] sm:$0xff]
    %v178 = vld [vmem:[%s2 + $0x60] sm:$0xff]
    %v179 = vld [vmem:[%s2 + $0x68] sm:$0xff]
    %v180 = vld [vmem:[%s2 + $0x70] sm:$0xff]
    %v181 = vld [vmem:[%s2 + $0x78] sm:$0xff]
    %v182 = vadd.s32 %v166, %v90
    %v183 = vadd.s32 %v167, %v95
    %v184 = vadd.s32 %v168, %v100
    %v185 = vadd.s32 %v169, %v105
    %v186 = vadd.s32 %v170, %v110
    %v187 = vadd.s32 %v171, %v115
    %v188 = vadd.s32 %v172, %v120
    %v189 = vadd.s32 %v173, %v125
    %v190 = vadd.s32 %v174, %v130
    %v191 = vadd.s32 %v175, %v135
    %v192 = vadd.s32 %v176, %v140
    %v193 = vadd.s32 %v177, %v145
    %v194 = vadd.s32 %v178, %v150
    %v195 = vadd.s32 %v179, %v155
    %v196 = vadd.s32 %v180, %v160
    %v197 = vadd.s32 %v181, %v165
    %198 = vst [vmem:[%s2] sm:$0xff] %v182
    %199 = vst [vmem:[%s2 + $0x8] sm:$0xff] %v183
    %200 = vst [vmem:[%s2 + $0x10] sm:$0xff] %v184
    %201 = vst [vmem:[%s2 + $0x18] sm:$0xff] %v185
    %202 = vst [vmem:[%s2 + $0x20] sm:$0xff] %v186
    %203 = vst [vmem:[%s2 + $0x28] sm:$0xff] %v187
    %204 = vst [vmem:[%s2 + $0x30] sm:$0xff] %v188
    %205 = vst [vmem:[%s2 + $0x38] sm:$0xff] %v189
    %206 = vst [vmem:[%s2 + $0x40] sm:$0xff] %v190
    %207 = vst [vmem:[%s2 + $0x48] sm:$0xff] %v191
    %208 = vst [vmem:[%s2 + $0x50] sm:$0xff] %v192
    %209 = vst [vmem:[%s2 + $0x58] sm:$0xff] %v193
    %210 = vst [vmem:[%s2 + $0x60] sm:$0xff] %v194
    %211 = vst [vmem:[%s2 + $0x68] sm:$0xff] %v195
    %212 = vst [vmem:[%s2 + $0x70] sm:$0xff] %v196
    %213 = vst [vmem:[%s2 + $0x78] sm:$0xff] %v197
    // Predicated region
    $region18: #{_histogram_counts.1} parent=1 // pred_check
      _
    $region19: #{_histogram_counts.1} parent=1 // pred_check_branch
      %215 = sbr.rel (0) target = $region21
    $region20: #{_histogram_counts.1} parent=1 // pred_region
      _
    $region21: #{_histogram_counts.1} parent=1 // pred_fallthru
      _
    // Predicated region
    $region22: #{_histogram_counts.1} parent=1 // pred_check
      _
    $region23: #{_histogram_counts.1} parent=1 // pred_check_branch
      %217 = sbr.rel (0) target = $region25
    $region24: #{_histogram_counts.1} parent=1 // pred_region
      _
    $region25: #{_histogram_counts.1} parent=1 // pred_fallthru
      _
    %218 = vsyncpa [#allocation3], 1

</llo_original>
